<compile_context>
chip_gen: v5e
topology: v5e:2x2
jax: 0.10.0
libtpu: 0.0.40
codegen_flags: <defaults>
</compile_context>

<pallas_src>
import jax
import jax.numpy as jnp
from jax import lax
from jax.experimental import pallas as pl
from jax.experimental.pallas import tpu as pltpu

# Set to jnp.bfloat16 on v6e/v7x for ~4x MXU throughput and half the matmul
# DMA bytes (accumulation stays f32).  Kept f32 here so the check against the
# f32 reference stays tight (and v5e has no bf16 VPU/EUP anyway).
MATMUL_INPUT_DTYPE = jnp.float32


# ---------------------------------------------------------------------------
# Kernel 1: cv1 = 1x1 conv (reads NCHW, contracts channels) + folded BN + SiLU
# ---------------------------------------------------------------------------
def _cv1_kernel(x_ref, w_ref, scale_ref, bias_ref, o_ref):
    # x_ref:      (1, C1, T)   NCHW slab, spatial on the lane axis
    # w_ref:      (C1, c_)
    # scale/bias: (1, c_)
    # o_ref:      (1, T, c_)   NHWC-flat slab, channels on the lane axis
    xb = x_ref[0].astype(MATMUL_INPUT_DTYPE)            # (C1, T)
    w = w_ref[...].astype(MATMUL_INPUT_DTYPE)           # (C1, c_)
    # Contract the channel axis of both operands: y = x^T @ w.  This folds the
    # NCHW -> NHWC transpose into the matmul itself.
    y = lax.dot_general(xb, w, (((0,), (0,)), ((), ())),
                        preferred_element_type=jnp.float32)   # (T, c_)
    y = y * scale_ref[...] + bias_ref[...]
    o_ref[0] = (y * jax.nn.sigmoid(y)).astype(o_ref.dtype)


def cv1_conv_bn_silu(x_nc_hw, w, scale, bias):
    # x_nc_hw: (N, C1, H*W) NCHW-flat.  Returns (N, H*W, c_) NHWC-flat.
    N, C1, HW = x_nc_hw.shape
    c_ = w.shape[1]
    # Spatial tile: a lane-dense multiple of 128 that divides H*W (falls back
    # to the full extent) so the conv pipelines over (batch, spatial) steps.
    T = HW
    for cand in (512, 256, 128):
        if HW % cand == 0:
            T = cand
            break
    return pl.pallas_call(
        _cv1_kernel,
        out_shape=jax.ShapeDtypeStruct((N, HW, c_), x_nc_hw.dtype),
        grid=(N, HW // T),
        in_specs=[
            pl.BlockSpec((1, C1, T), lambda n, t: (n, 0, t)),
            pl.BlockSpec((C1, c_), lambda n, t: (0, 0)),
            pl.BlockSpec((1, c_), lambda n, t: (0, 0)),
            pl.BlockSpec((1, c_), lambda n, t: (0, 0)),
        ],
        out_specs=pl.BlockSpec((1, T, c_), lambda n, t: (n, t, 0)),
        compiler_params=pltpu.CompilerParams(
            dimension_semantics=("parallel", "parallel")),
    )(x_nc_hw, w, scale, bias)


# ---------------------------------------------------------------------------
# Kernel 2: fused [maxpool5 x3 + concat + cv2(1x1 conv + BN + SiLU)]
# ---------------------------------------------------------------------------
def _sppf_tail_kernel(x1_ref, w2_ref, scale_ref, bias_ref, o_ref):
    # x1_ref:     (1, H, W, c_)   NHWC tile (one batch element)
    # w2_ref:     (4, c_, c2)     cv2 weight split by channel group
    # scale/bias: (1, c2)
    # o_ref:      (1, H*W, c2)    NHWC-flat output
    x1 = x1_ref[0]                                       # (H, W, c_) f32
    H, W, c_ = x1.shape
    hw = H * W
    ninf = jnp.float32(-jnp.inf)
    # Hoisted once; reused by all three pools (avoid re-broadcasting per call).
    col = lax.broadcasted_iota(jnp.int32, (H, W, c_), 1)

    def pool5(t):
        # MaxPool2d(kernel=5, stride=1, padding=2) with -inf padding.
        # H direction (major axis, cheap re-addressing): two -inf border rows
        # each side, running max over the five row-shifted views.
        border = jnp.full((2, W, c_), ninf, dtype=t.dtype)
        tp = jnp.concatenate([border, t, border], axis=0)        # (H+4, W, c_)
        m = tp[0:H]
        for d in range(1, 5):
            m = jnp.maximum(m, tp[d:d + H])
        # W direction: sublane rotation (XLU slot, otherwise idle) + boundary
        # mask -- no padded scratch fill, no misaligned sublane slices.
        out = m
        for d in (-2, -1, 1, 2):
            shifted = pltpu.roll(m, shift=(-d) % W, axis=1)      # [:, j] = m[:, j+d]
            valid = jnp.logical_and(col + d >= 0, col + d < W)
            out = jnp.maximum(out, jnp.where(valid, shifted, ninf))
        return out

    y1 = pool5(x1)
    y2 = pool5(y1)
    y3 = pool5(y2)

    # cv2 over the *virtual* concat [x1, y1, y2, y3]: accumulate four partial
    # matmuls over the channel groups so the 4*c_ tensor never touches HBM.
    def pw(t, g):
        return jnp.dot(t.reshape(hw, c_).astype(MATMUL_INPUT_DTYPE),
                       w2_ref[g].astype(MATMUL_INPUT_DTYPE),
                       preferred_element_type=jnp.float32)

    acc = pw(x1, 0) + pw(y1, 1) + pw(y2, 2) + pw(y3, 3)          # (hw, c2)
    acc = acc * scale_ref[...] + bias_ref[...]
    o_ref[0] = (acc * jax.nn.sigmoid(acc)).astype(o_ref.dtype)


def sppf_tail(x1_nhwc, w2, scale, bias):
    # x1_nhwc: (N, H, W, c_).  Returns (N, H*W, c2) NHWC-flat.
    N, H, W, c_ = x1_nhwc.shape
    c2 = w2.shape[1]
    w2_grp = w2.reshape(4, c_, c2)   # free reshape; group-indexed in-kernel
    # TODO(synk): for very large feature maps on v7x (64 MiB VMEM) this should
    # additionally tile over H-strips with a 6-row halo (and set
    # vmem_limit_bytes); whole-(H,W,c_) slabs per batch are plenty for SPPF's
    # usual low-resolution inputs.
    return pl.pallas_call(
        _sppf_tail_kernel,
        out_shape=jax.ShapeDtypeStruct((N, H * W, c2), x1_nhwc.dtype),
        grid=(N,),
        in_specs=[
            pl.BlockSpec((1, H, W, c_), lambda n: (n, 0, 0, 0)),
            pl.BlockSpec((4, c_, c2), lambda n: (0, 0, 0)),
            pl.BlockSpec((1, c2), lambda n: (0, 0)),
            pl.BlockSpec((1, c2), lambda n: (0, 0)),
        ],
        out_specs=pl.BlockSpec((1, H * W, c2), lambda n: (n, 0, 0)),
        compiler_params=pltpu.CompilerParams(
            dimension_semantics=("parallel",)),
    )(x1_nhwc, w2_grp, scale, bias)


# ---------------------------------------------------------------------------
# SPPF forward (wrapper; only free reshapes + one output transpose as glue)
# ---------------------------------------------------------------------------
def sppf_forward(x_nchw, params):
    w1, s1, b1, w2, s2, b2 = params
    N, C1, H, W = x_nchw.shape
    c_ = w1.shape[1]
    c2 = w2.shape[1]

    # cv1 reads NCHW directly (only a free reshape) -> NHWC-flat activation.
    x1 = cv1_conv_bn_silu(x_nchw.reshape(N, C1, H * W), w1, s1, b1)
    x1 = x1.reshape(N, H, W, c_)                   # free dim split

    # pools + concat + cv2 fused in one VMEM-resident kernel per batch.
    out = sppf_tail(x1, w2, s2, b2)                # (N, H*W, c2)

    # TODO(synk): the remaining NHWC->NCHW transpose could be absorbed into
    # the tail kernel with an in-kernel XLU transpose of the (H*W, c2) tile.
    return jnp.transpose(out, (0, 2, 1)).reshape(N, c2, H, W)


# ---------------------------------------------------------------------------
# Deterministic synthetic parameters (Conv2d has bias=False; BN folded, eval)
# ---------------------------------------------------------------------------
def init_params(key, c1, c2):
    c_ = c1 // 2
    eps = 1e-5
    ks = jax.random.split(key, 10)

    def bn_fold(kg, kb, km, kv, c):
        gamma = 1.0 + 0.1 * jax.random.normal(kg, (c,), jnp.float32)
        beta = 0.1 * jax.random.normal(kb, (c,), jnp.float32)
        mean = 0.05 * jax.random.normal(km, (c,), jnp.float32)
        var = 1.0 + 0.1 * jnp.abs(jax.random.normal(kv, (c,), jnp.float32))
        scale = gamma / jnp.sqrt(var + eps)
        bias = beta - mean * scale
        return scale.reshape(1, c), bias.reshape(1, c)

    # cv1: 1x1 conv c1 -> c_ ; weight stored as (c_in, c_out) for matmul
    w1 = 0.1 * jax.random.normal(ks[0], (c1, c_), jnp.float32)
    s1, b1 = bn_fold(ks[1], ks[2], ks[3], ks[4], c_)
    # cv2: 1x1 conv 4*c_ -> c2
    w2 = 0.1 * jax.random.normal(ks[5], (4 * c_, c2), jnp.float32)
    s2, b2 = bn_fold(ks[6], ks[7], ks[8], ks[9], c2)
    return (w1, s1, b1, w2, s2, b2)


# ---------------------------------------------------------------------------
# Pure-JAX reference (for correctness check only)
# ---------------------------------------------------------------------------
def sppf_reference(x_nchw, params):
    w1, s1, b1, w2, s2, b2 = params
    x = jnp.transpose(x_nchw, (0, 2, 3, 1))

    def pw(t, w, s, b):
        y = jnp.einsum("nhwc,cd->nhwd", t, w) * s + b
        return y * jax.nn.sigmoid(y)

    def mp(t):
        return lax.reduce_window(
            t, -jnp.inf, lax.max, (1, 5, 5, 1), (1, 1, 1, 1),
            ((0, 0), (2, 2), (2, 2), (0, 0)))

    x1 = pw(x, w1, s1, b1)
    y1 = mp(x1)
    y2 = mp(y1)
    y3 = mp(y2)
    out = pw(jnp.concatenate([x1, y1, y2, y3], axis=-1), w2, s2, b2)
    return jnp.transpose(out, (0, 3, 1, 2))


if __name__ == "__main__":
    key = jax.random.PRNGKey(0)
    kx, kp = jax.random.split(key)

    N, C1, H, W = 2, 4, 16, 16   # SPPF(c1=4, c2=8): c_ = 2
    C2 = 8

    x = jax.random.normal(kx, (N, C1, H, W), jnp.float32)
    params = init_params(kp, C1, C2)

    out = jax.block_until_ready(sppf_forward(x, params))
    ref = sppf_reference(x, params)

    assert out.shape == (N, C2, H, W), out.shape
    assert jnp.allclose(out, ref, atol=1e-5, rtol=1e-5), float(
        jnp.max(jnp.abs(out - ref)))

    print("KERNEL_OK")
</pallas_src>

<mosaic_0001>
module attributes {stable_mosaic.version = 11 : i64} {
  func.func @_cv1_kernel(%arg0: i32, %arg1: i32, %arg2: memref<1x4x256xf32, #tpu.memory_space<vmem>>, %arg3: memref<4x2xf32, #tpu.memory_space<vmem>>, %arg4: memref<1x2xf32, #tpu.memory_space<vmem>>, %arg5: memref<1x2xf32, #tpu.memory_space<vmem>>, %arg6: memref<1x256x2xf32, #tpu.memory_space<vmem>>) attributes {dimension_semantics = [#tpu.dimension_semantics<parallel>, #tpu.dimension_semantics<parallel>], iteration_bounds = array<i64: 2, 1>, scalar_prefetch = 0 : i64, scratch_operands = 0 : i64, tpu.core_type = #tpu.core_type<tc>, window_params = [{transform_indices = @transform_0, window_bounds = array<i64: 1, 4, 256>}, {pipeline_mode = #tpu.pipeline_mode<synchronous>, transform_indices = @transform_1, window_bounds = array<i64: 4, 2>}, {pipeline_mode = #tpu.pipeline_mode<synchronous>, transform_indices = @transform_2, window_bounds = array<i64: 1, 2>}, {pipeline_mode = #tpu.pipeline_mode<synchronous>, transform_indices = @transform_3, window_bounds = array<i64: 1, 2>}, {transform_indices = @transform_4, window_bounds = array<i64: 1, 256, 2>}]} {
    %c0 = arith.constant 0 : index
    %c0_0 = arith.constant 0 : index
    %c0_1 = arith.constant 0 : index
    %0 = vector.load %arg2[%c0, %c0_0, %c0_1] : memref<1x4x256xf32, #tpu.memory_space<vmem>>, vector<1x4x256xf32>
    %1 = vector.shape_cast %0 : vector<1x4x256xf32> to vector<4x256xf32>
    %c0_2 = arith.constant 0 : index
    %c0_3 = arith.constant 0 : index
    %2 = vector.load %arg3[%c0_2, %c0_3] : memref<4x2xf32, #tpu.memory_space<vmem>>, vector<4x2xf32>
    %cst = arith.constant dense<0.000000e+00> : vector<256x2xf32>
    %3 = tpu.matmul %1, %2, %cst {dimension_numbers = #tpu.dot_dimension_numbers<[0], [0], [1], [1], [0, 1, 1, 1], [], []>} : vector<4x256xf32>, vector<4x2xf32>, vector<256x2xf32> -> vector<256x2xf32>
    %c0_4 = arith.constant 0 : index
    %c0_5 = arith.constant 0 : index
    %4 = vector.load %arg4[%c0_4, %c0_5] : memref<1x2xf32, #tpu.memory_space<vmem>>, vector<1x2xf32>
    %5 = vector.broadcast %4 : vector<1x2xf32> to vector<256x2xf32>
    %6 = arith.mulf %3, %5 : vector<256x2xf32>
    %c0_6 = arith.constant 0 : index
    %c0_7 = arith.constant 0 : index
    %7 = vector.load %arg5[%c0_6, %c0_7] : memref<1x2xf32, #tpu.memory_space<vmem>>, vector<1x2xf32>
    %8 = vector.broadcast %7 : vector<1x2xf32> to vector<256x2xf32>
    %9 = arith.addf %6, %8 : vector<256x2xf32>
    %10 = arith.negf %9 : vector<256x2xf32>
    %11 = math.exp %10 : vector<256x2xf32>
    %cst_8 = arith.constant 1.000000e+00 : f32
    %12 = vector.broadcast %cst_8 : f32 to vector<256x2xf32>
    %13 = arith.addf %12, %11 : vector<256x2xf32>
    %14 = arith.divf %12, %13 : vector<256x2xf32>
    %15 = arith.mulf %9, %14 : vector<256x2xf32>
    %c0_9 = arith.constant 0 : index
    %c0_10 = arith.constant 0 : index
    %c0_11 = arith.constant 0 : index
    %16 = vector.load %arg6[%c0_9, %c0_10, %c0_11] : memref<1x256x2xf32, #tpu.memory_space<vmem>>, vector<1x256x2xf32>
    %17 = vector.shape_cast %16 : vector<1x256x2xf32> to vector<256x2xf32>
    %18 = vector.shape_cast %15 : vector<256x2xf32> to vector<1x256x2xf32>
    tpu.vector_store %arg6[%c0_9, %c0_10, %c0_11], %18 {strides = array<i32>} : memref<1x256x2xf32, #tpu.memory_space<vmem>>, vector<1x256x2xf32>,
    return
  }
  func.func @transform_0(%arg0: i32, %arg1: i32) -> (i32, i32, i32) {
    %c0_i32 = arith.constant 0 : i32
    %c0_i32_0 = arith.constant 0 : i32
    return %arg0, %c0_i32, %arg1 : i32, i32, i32
  }
  func.func @transform_1(%arg0: i32, %arg1: i32) -> (i32, i32) {
    %c0_i32 = arith.constant 0 : i32
    %c0_i32_0 = arith.constant 0 : i32
    %c0_i32_1 = arith.constant 0 : i32
    return %c0_i32, %c0_i32_0 : i32, i32
  }
  func.func @transform_2(%arg0: i32, %arg1: i32) -> (i32, i32) {
    %c0_i32 = arith.constant 0 : i32
    %c0_i32_0 = arith.constant 0 : i32
    %c0_i32_1 = arith.constant 0 : i32
    return %c0_i32, %c0_i32_0 : i32, i32
  }
  func.func @transform_3(%arg0: i32, %arg1: i32) -> (i32, i32) {
    %c0_i32 = arith.constant 0 : i32
    %c0_i32_0 = arith.constant 0 : i32
    %c0_i32_1 = arith.constant 0 : i32
    return %c0_i32, %c0_i32_0 : i32, i32
  }
  func.func @transform_4(%arg0: i32, %arg1: i32) -> (i32, i32, i32) {
    %c0_i32 = arith.constant 0 : i32
    %c0_i32_0 = arith.constant 0 : i32
    return %arg0, %arg1, %c0_i32 : i32, i32, i32
  }
}

</mosaic_0001>

<llo_original>
// kernel: tpu_custom_call.1
$region0: #{tpu_custom_call.1}
  #allocation0 [shape = 'u32[]', space=smem, size = 0x4, offset = 0x4, fixed_abs, tag = 'smem constant byte address 0x4 - core index']
  #allocation1 [shape = 'u32[72,128]{1,0:T(1,128)}', space=vmem, size = 0x9000, scoped, tag = 'internal scratch']
  %s0 = inlined_call_operand.hbm [shape: f32[2,4,256], index: 0, kind: input, shape index: {}]
  %s1 = inlined_call_operand.vmem [shape: f32[4,2], index: 1, kind: input, shape index: {}]
  %s2 = inlined_call_operand.vmem [shape: f32[1,2], index: 2, kind: input, shape index: {}]
  %s3 = inlined_call_operand.vmem [shape: f32[1,2], index: 3, kind: input, shape index: {}]
  %s4 = inlined_call_operand.vmem [shape: f32[2,256,2], index: 4, kind: output, shape index: {}]
  %s5 = sld [smem:[#allocation0]]
  $region53: #{tpu_custom_call.1} parent=0
    _
  %s7 = ssub.s32 1, %s5
  %s8 = scalar_select 0, %s7, %s5
  $region1: #{tpu_custom_call.1} parent=0
    #allocation2 [shape = 'u8[8192]{0}', space=vmem, size = 0x2000, scoped, tag = 'input window, operand 0']
    #allocation3 [shape = 's32[2]{0}', space=sflag, size = 0x8, scoped, tag = 'scoped memory for tpu_custom_call.1']
    %9 = vsyncpa [#allocation3], 0
    %s10 = scalar_lea.sflag [#allocation3], 1
    %11 = vsyncpa %s10, 0
    loop: start=0, step=1, limit=4
    $region2: #{tpu_custom_call.1} parent=1 // loop_pre_header
      _
    $region3: #{tpu_custom_call.1} parent=1 // loop_header
      %s13 = sphi 0, %s17
      %p14 = scmp.ge.s32.totalorder %s13, 4
      %s20 = sphi 0, %s32
      %s21 = sphi 0, %s28
      %s22 = sphi 0, %s20
      %s23 = sphi 0, %s21
      %s24 = sphi 0, %s22
      %s25 = sphi 0, %s23
      %s37 = sphi 0, %s39
      %s40 = sphi 0, %s37
      %s41 = sphi 0, %s40
      %s57 = sphi 0, %s41
      %s61 = sphi 0, %s61
      %s63 = sphi 0, %s61
      %s64 = sphi 0, %s63
      %s78 = sphi 0, %s64
      %s82 = sphi 0, %s82
      %s84 = sphi 0, %s82
      %s85 = sphi 0, %s84
      %s99 = sphi 0, %s85
      %s103 = sphi 0, %s103
      %s105 = sphi 0, %s103
      %s106 = sphi 0, %s105
      %s120 = sphi 0, %s106
      %s128 = sphi 0, %s130
      %s131 = sphi 0, %s128
      %s132 = sphi 0, %s131
      %s148 = sphi 0, %s132
    $region4: #{tpu_custom_call.1} parent=1 // loop_header_branch
      %16 = sbr.rel (%p14) target = $region8
    $region5: #{tpu_custom_call.1} parent=1 // loop_body
      %s18 = ssub.s32 %s13, 1
      %s19 = ssub.s32 %s13, 2
      %s26 = sadd.s32 1, %s21
      %p27 = scmp.ge.s32.totalorder %s26, 1
      %s28 = scalar_select %p27, 0, %s26
      %s29 = sadd.s32 1, %s20
      %s30 = scalar_select %p27, %s29, %s20
      %p31 = scmp.ge.s32.totalorder %s30, 2
      %s32 = scalar_select %p31, 0, %s30
      %s33 = ssub.s32 %s20, %s32
      %s34 = ssub.s32 %s21, %s28
      %s35 = sor.u32 %s33, %s34
      %p36 = scmp.eq.s32.totalorder %s35, 0
      %s38 = sadd.s32 %s37, 1
      %s39 = scalar_select %p36, %s37, %s38
      %p42 = pneg %p36
      %p43 = scmp.eq.s32.totalorder %s13, 1
      %p44 = por %p42, %p43
      %p45 = scmp.ne.s32.totalorder %s37, %s40
      %p46 = scmp.eq.s32.totalorder %s13, 0
      %p47 = por %p45, %p46
      %p48 = scmp.ne.s32.totalorder %s37, %s40
      %p49 = scmp.eq.s32.totalorder %s18, 1
      %p50 = por %p48, %p49
      %p51 = scmp.ne.s32.totalorder %s40, %s41
      %p52 = scmp.eq.s32.totalorder %s18, 0
      %p53 = por %p51, %p52
      %p54 = scmp.ne.s32.totalorder %s40, %s41
      %p55 = scmp.eq.s32.totalorder %s19, 1
      %p56 = por %p54, %p55
      %p58 = scmp.ne.s32.totalorder %s41, %s57
      %p59 = scmp.eq.s32.totalorder %s19, 0
      %p60 = por %p58, %p59
      %s62 = sadd.s32 %s61, 1
      %p65 = scmp.eq.s32.totalorder %s13, 1
      %p66 = scmp.ne.s32.totalorder %s61, %s63
      %p67 = scmp.eq.s32.totalorder %s13, 0
      %p68 = por %p66, %p67
      %p69 = scmp.ne.s32.totalorder %s61, %s63
      %p70 = scmp.eq.s32.totalorder %s18, 1
      %p71 = por %p69, %p70
      %p72 = scmp.ne.s32.totalorder %s63, %s64
      %p73 = scmp.eq.s32.totalorder %s18, 0
      %p74 = por %p72, %p73
      %p75 = scmp.ne.s32.totalorder %s63, %s64
      %p76 = scmp.eq.s32.totalorder %s19, 1
      %p77 = por %p75, %p76
      %p79 = scmp.ne.s32.totalorder %s64, %s78
      %p80 = scmp.eq.s32.totalorder %s19, 0
      %p81 = por %p79, %p80
      %s83 = sadd.s32 %s82, 1
      %p86 = scmp.eq.s32.totalorder %s13, 1
      %p87 = scmp.ne.s32.totalorder %s82, %s84
      %p88 = scmp.eq.s32.totalorder %s13, 0
      %p89 = por %p87, %p88
      %p90 = scmp.ne.s32.totalorder %s82, %s84
      %p91 = scmp.eq.s32.totalorder %s18, 1
      %p92 = por %p90, %p91
      %p93 = scmp.ne.s32.totalorder %s84, %s85
      %p94 = scmp.eq.s32.totalorder %s18, 0
      %p95 = por %p93, %p94
      %p96 = scmp.ne.s32.totalorder %s84, %s85
      %p97 = scmp.eq.s32.totalorder %s19, 1
      %p98 = por %p96, %p97
      %p100 = scmp.ne.s32.totalorder %s85, %s99
      %p101 = scmp.eq.s32.totalorder %s19, 0
      %p102 = por %p100, %p101
      %s104 = sadd.s32 %s103, 1
      %p107 = scmp.eq.s32.totalorder %s13, 1
      %p108 = scmp.ne.s32.totalorder %s103, %s105
      %p109 = scmp.eq.s32.totalorder %s13, 0
      %p110 = por %p108, %p109
      %p111 = scmp.ne.s32.totalorder %s103, %s105
      %p112 = scmp.eq.s32.totalorder %s18, 1
      %p113 = por %p111, %p112
      %p114 = scmp.ne.s32.totalorder %s105, %s106
      %p115 = scmp.eq.s32.totalorder %s18, 0
      %p116 = por %p114, %p115
      %p117 = scmp.ne.s32.totalorder %s105, %s106
      %p118 = scmp.eq.s32.totalorder %s19, 1
      %p119 = por %p117, %p118
      %p121 = scmp.ne.s32.totalorder %s106, %s120
      %p122 = scmp.eq.s32.totalorder %s19, 0
      %p123 = por %p121, %p122
      %s124 = ssub.s32 %s20, %s32
      %s125 = ssub.s32 %s21, %s28
      %s126 = sor.u32 %s124, %s125
      %p127 = scmp.eq.s32.totalorder %s126, 0
      %s129 = sadd.s32 %s128, 1
      %s130 = scalar_select %p127, %s128, %s129
      %p133 = pneg %p127
      %p134 = scmp.eq.s32.totalorder %s13, 1
      %p135 = por %p133, %p134
      %p136 = scmp.ne.s32.totalorder %s128, %s131
      %p137 = scmp.eq.s32.totalorder %s13, 0
      %p138 = por %p136, %p137
      %p139 = scmp.ne.s32.totalorder %s128, %s131
      %p140 = scmp.eq.s32.totalorder %s18, 1
      %p141 = por %p139, %p140
      %p142 = scmp.ne.s32.totalorder %s131, %s132
      %p143 = scmp.eq.s32.totalorder %s18, 0
      %p144 = por %p142, %p143
      %p145 = scmp.ne.s32.totalorder %s131, %s132
      %p146 = scmp.eq.s32.totalorder %s19, 1
      %p147 = por %p145, %p146
      %p149 = scmp.ne.s32.totalorder %s132, %s148
      %p150 = scmp.eq.s32.totalorder %s19, 0
      %p151 = por %p149, %p150
      %p152 = scmp.le.s32.totalorder 1, %s13
      %p153 = scmp.lt.s32.totalorder %s13, 3
      %p154 = pnand %p152, %p153
      %p155 = pneg %p154
      // Predicated region
      $region9: #{tpu_custom_call.1} parent=5 // pred_check
        _
      $region10: #{tpu_custom_call.1} parent=5 // pred_check_branch
        %157 = sbr.rel (%p154) target = $region12
      $region11: #{tpu_custom_call.1} parent=5 // pred_region
        %s158 = ssub.s32 %s13, 1
        // Predicated region
        $region13: #{tpu_custom_call.1} parent=11 // pred_check
          %p159 = pneg %p74
        $region14: #{tpu_custom_call.1} parent=11 // pred_check_branch
          %161 = sbr.rel (%p159) target = $region16
        $region15: #{tpu_custom_call.1} parent=11 // pred_region
          _
        $region16: #{tpu_custom_call.1} parent=11 // pred_fallthru
          _
        // Predicated region
        $region17: #{tpu_custom_call.1} parent=11 // pred_check
          %p162 = pneg %p95
        $region18: #{tpu_custom_call.1} parent=11 // pred_check_branch
          %164 = sbr.rel (%p162) target = $region20
        $region19: #{tpu_custom_call.1} parent=11 // pred_region
          _
        $region20: #{tpu_custom_call.1} parent=11 // pred_fallthru
          _
        // Predicated region
        $region21: #{tpu_custom_call.1} parent=11 // pred_check
          %p165 = pneg %p116
        $region22: #{tpu_custom_call.1} parent=11 // pred_check_branch
          %167 = sbr.rel (%p165) target = $region24
        $region23: #{tpu_custom_call.1} parent=11 // pred_region
          _
        $region24: #{tpu_custom_call.1} parent=11 // pred_fallthru
          _
      $region12: #{tpu_custom_call.1} parent=5 // pred_fallthru
        _
      %p168 = scmp.lt.s32.totalorder %s13, 2
      // Predicated region
      $region25: #{tpu_custom_call.1} parent=5 // pred_check
        %p169 = pneg %p168
      $region26: #{tpu_custom_call.1} parent=5 // pred_check_branch
        %171 = sbr.rel (%p169) target = $region28
      $region27: #{tpu_custom_call.1} parent=5 // pred_region
        // Predicated region
        $region29: #{tpu_custom_call.1} parent=27 // pred_check
          %p172 = pneg %p47
        $region30: #{tpu_custom_call.1} parent=27 // pred_check_branch
          %174 = sbr.rel (%p172) target = $region32
        $region31: #{tpu_custom_call.1} parent=27 // pred_region
          %s175 = sand.u32 %s37, 1
          %s176 = scalar_lea.sflag [#allocation3], %s175
          %s177 = sand.u32 %s37, 1
          %s178 = smul.addr %s177, 8
          %s179 = scalar_lea.vmem [#allocation2], %s178
          %s180 = smul.u32 2, %s21
          %182 = vsyncadd %s176, 0
          %s183 = smul.addr %s20, 2
          %s184 = sadd.s32 %s180, %s183
          %s185 = smul.addr %s184, 4
          %s186 = scalar_lea.hbm %s0, %s185
          %s188 = sshll.u32 %s186, 4
          %s189 = int_to_ptr.hbm [resolvable:$true] %s188
          %s190 = sshll.u32 %s179, 4
          %s191 = int_to_ptr.vmem [resolvable:$true] %s190
          %193 = dma.hbm_to_vmem [thread:$0]  %s189, 128, %s191, %s176
        $region32: #{tpu_custom_call.1} parent=27 // pred_fallthru
          _
      $region28: #{tpu_custom_call.1} parent=5 // pred_fallthru
        _
      %p194 = scmp.le.s32.totalorder 1, %s13
      %p195 = scmp.lt.s32.totalorder %s13, 3
      %p196 = pnand %p194, %p195
      %p197 = pneg %p196
      // Predicated region
      $region33: #{tpu_custom_call.1} parent=5 // pred_check
        _
      $region34: #{tpu_custom_call.1} parent=5 // pred_check_branch
        %199 = sbr.rel (%p196) target = $region36
      $region35: #{tpu_custom_call.1} parent=5 // pred_region
        %s200 = ssub.s32 %s13, 1
        %s201 = sand.u32 %s40, 1
        %s202 = scalar_lea.sflag [#allocation3], %s201
        %s203 = sand.u32 %s40, 1
        %s204 = smul.addr %s203, 8
        %s205 = scalar_lea.vmem [#allocation2], %s204
        // Predicated region
        $region37: #{tpu_custom_call.1} parent=35 // pred_check
          %p206 = pneg %p53
        $region38: #{tpu_custom_call.1} parent=35 // pred_check_branch
          %208 = sbr.rel (%p206) target = $region40
        $region39: #{tpu_custom_call.1} parent=35 // pred_region
          %210 = dma.done %s202, 128
        $region40: #{tpu_custom_call.1} parent=35 // pred_fallthru
          _
        %s211 = sand.u32 %s40, 1
        %s212 = scalar_lea.sflag [#allocation3], %s211
        %s213 = sand.u32 %s40, 1
        %s214 = smul.addr %s213, 8
        %s215 = scalar_lea.vmem [#allocation2], %s214
        %p216 = pneg %p53
        %p217 = pneg %p50
        %p218 = pneg %p74
        %p219 = pneg %p71
        %p220 = pneg %p95
        %p221 = pneg %p92
        %p222 = pneg %p116
        %p223 = pneg %p113
        %p224 = pneg %p144
        %p225 = pneg %p141
        %s226 = smul.u32 32, %s23
        %p227 = scmp.lt.s32.totalorder %s22, 1
        %s228 = scalar_select %p227, %s22, 1
        %p229 = scmp.lt.s32.totalorder %s226, 31
        %s230 = scalar_select %p229, %s226, 31
        %s231 = smul.addr %s228, 32
        %s232 = sadd.s32 %s230, %s231
        %s233 = smul.addr %s232, 8
        %s234 = scalar_lea.vmem %s4, %s233
        %s235 = smul.u32 2, %s23
        %s236 = smul.u32 32, %s23
        %p237 = scmp.lt.s32.totalorder %s22, 1
        %s238 = scalar_select %p237, %s22, 1
        %p239 = scmp.lt.s32.totalorder %s236, 31
        %s240 = scalar_select %p239, %s236, 31
        %s241 = smul.addr %s238, 32
        %s242 = sadd.s32 %s240, %s241
        %s243 = smul.addr %s242, 8
        %s244 = scalar_lea.vmem %s4, %s243
        %s245 = smul.u32 32, %s23
        %v246 = vld [vmem:[%s205] sm:$0xff]
        %v247 = vld [vmem:[%s1] sm:$0xf]
        %249 = vst [vmem:[#allocation1] ss:$2 sm:$0xff] %v246
        %v250 = vld.sshfl [vmem:[#allocation1] sm:$0xff pattern:$0x75316420]
        %v251 = vld.sshfl [vmem:[#allocation1 + $0x8] sm:$0xff pattern:$0x75316420]
        %254 = vxpose.xlu0.b32.start [1/16] %v250, 128
        %255 = vxpose.xlu0.b32.cont [2/16] 0.0, 128
        %256 = vxpose.xlu0.b32.cont [3/16] 0.0, 128
        %257 = vxpose.xlu0.b32.cont [4/16] 0.0, 128
        %258 = vxpose.xlu0.b32.cont [5/16] 0.0, 128
        %259 = vxpose.xlu0.b32.cont [6/16] 0.0, 128
        %260 = vxpose.xlu0.b32.cont [7/16] 0.0, 128
        %261 = vxpose.xlu0.b32.cont [8/16] 0.0, 128
        %262 = vxpose.xlu0.b32.cont [9/16] 0.0, 128
        %263 = vxpose.xlu0.b32.cont [10/16] 0.0, 128
        %264 = vxpose.xlu0.b32.cont [11/16] 0.0, 128
        %265 = vxpose.xlu0.b32.cont [12/16] 0.0, 128
        %266 = vxpose.xlu0.b32.cont [13/16] 0.0, 128
        %267 = vxpose.xlu0.b32.cont [14/16] 0.0, 128
        %268 = vxpose.xlu0.b32.cont [15/16] 0.0, 128
        %269 = vxpose.xlu0.b32.end [16/16] 0.0, 128
        %v270 = vpop.trf.xlu0
        %v271 = vpop.trf.xlu0
        %v272 = vpop.trf.xlu0
        %v273 = vpop.trf.xlu0
        %v274 = vpop.trf.xlu0
        %v275 = vpop.trf.xlu0
        %v276 = vpop.trf.xlu0
        %v277 = vpop.trf.xlu0
        %v278 = vpop.trf.xlu0
        %v279 = vpop.trf.xlu0
        %v280 = vpop.trf.xlu0
        %v281 = vpop.trf.xlu0
        %v282 = vpop.trf.xlu0
        %v283 = vpop.trf.xlu0
        %v284 = vpop.trf.xlu0
        %v285 = vpop.trf.xlu0
        %286 = vxpose.xlu0.b32.start [1/16] %v251, 128
        %287 = vxpose.xlu0.b32.cont [2/16] 0.0, 128
        %288 = vxpose.xlu0.b32.cont [3/16] 0.0, 128
        %289 = vxpose.xlu0.b32.cont [4/16] 0.0, 128
        %290 = vxpose.xlu0.b32.cont [5/16] 0.0, 128
        %291 = vxpose.xlu0.b32.cont [6/16] 0.0, 128
        %292 = vxpose.xlu0.b32.cont [7/16] 0.0, 128
        %293 = vxpose.xlu0.b32.cont [8/16] 0.0, 128
        %294 = vxpose.xlu0.b32.cont [9/16] 0.0, 128
        %295 = vxpose.xlu0.b32.cont [10/16] 0.0, 128
        %296 = vxpose.xlu0.b32.cont [11/16] 0.0, 128
        %297 = vxpose.xlu0.b32.cont [12/16] 0.0, 128
        %298 = vxpose.xlu0.b32.cont [13/16] 0.0, 128
        %299 = vxpose.xlu0.b32.cont [14/16] 0.0, 128
        %300 = vxpose.xlu0.b32.cont [15/16] 0.0, 128
        %301 = vxpose.xlu0.b32.end [16/16] 0.0, 128
        %v302 = vpop.trf.xlu0
        %v303 = vpop.trf.xlu0
        %v304 = vpop.trf.xlu0
        %v305 = vpop.trf.xlu0
        %v306 = vpop.trf.xlu0
        %v307 = vpop.trf.xlu0
        %v308 = vpop.trf.xlu0
        %v309 = vpop.trf.xlu0
        %v310 = vpop.trf.xlu0
        %v311 = vpop.trf.xlu0
        %v312 = vpop.trf.xlu0
        %v313 = vpop.trf.xlu0
        %v314 = vpop.trf.xlu0
        %v315 = vpop.trf.xlu0
        %v316 = vpop.trf.xlu0
        %v317 = vpop.trf.xlu0
        %vm318 = vcmask 31744
        %v320 = vsel %vm318, %v270, 0
        %v323 = vsel %vm318, %v271, 0
        %v326 = vsel %vm318, %v272, 0
        %v329 = vsel %vm318, %v273, 0
        %v332 = vsel %vm318, %v274, 0
        %v335 = vsel %vm318, %v275, 0
        %v338 = vsel %vm318, %v276, 0
        %v341 = vsel %vm318, %v277, 0
        %v344 = vsel %vm318, %v278, 0
        %v347 = vsel %vm318, %v279, 0
        %v350 = vsel %vm318, %v280, 0
        %v353 = vsel %vm318, %v281, 0
        %v356 = vsel %vm318, %v282, 0
        %v359 = vsel %vm318, %v283, 0
        %v362 = vsel %vm318, %v284, 0
        %v365 = vsel %vm318, %v285, 0
        %v368 = vsel %vm318, %v302, 0
        %v371 = vsel %vm318, %v303, 0
        %v374 = vsel %vm318, %v304, 0
        %v377 = vsel %vm318, %v305, 0
        %v380 = vsel %vm318, %v306, 0
        %v383 = vsel %vm318, %v307, 0
        %v386 = vsel %vm318, %v308, 0
        %v389 = vsel %vm318, %v309, 0
        %v392 = vsel %vm318, %v310, 0
        %v395 = vsel %vm318, %v311, 0
        %v398 = vsel %vm318, %v312, 0
        %v401 = vsel %vm318, %v313, 0
        %v404 = vsel %vm318, %v314, 0
        %v407 = vsel %vm318, %v315, 0
        %v410 = vsel %vm318, %v316, 0
        %v413 = vsel %vm318, %v317, 0
        %vm415 = vcmask 1043456
        %v417 = vsel %vm415, %v247, 0
        %419 = vmatpush.msra.mxu0 0.0
        %420 = vmatpush.msra.mxu0 0.0
        %421 = vmatpush.msra.mxu0 0.0
        %422 = vmatpush.msra.mxu0 0.0
        %423 = vmatpush.msra.mxu0 0.0
        %424 = vmatpush.msra.mxu0 0.0
        %425 = vmatpush.msra.mxu0 0.0
        %426 = vmatpush.msra.mxu0 0.0
        %427 = vmatpush.msra.mxu0 0.0
        %428 = vmatpush.msra.mxu0 0.0
        %429 = vmatpush.msra.mxu0 0.0
        %430 = vmatpush.msra.mxu0 0.0
        %431 = vmatpush.msra.mxu0 0.0
        %432 = vmatpush.msra.mxu0 0.0
        %433 = vmatpush.msra.mxu0 0.0
        %434 = vmatpush.msra.mxu0 %v417
        %435 = vmatmul.f32.gmra.mxu0 %v320
        %v436 = vpop.f32.mrf.mxu0
        %v437 = vadd.f32 0.0, %v436
        %438 = vmatmul.f32.gmra.mxu0 %v323
        %v439 = vpop.f32.mrf.mxu0
        %v440 = vadd.f32 0.0, %v439
        %441 = vmatmul.f32.gmra.mxu0 %v326
        %v442 = vpop.f32.mrf.mxu0
        %v443 = vadd.f32 0.0, %v442
        %444 = vmatmul.f32.gmra.mxu0 %v329
        %v445 = vpop.f32.mrf.mxu0
        %v446 = vadd.f32 0.0, %v445
        %447 = vmatmul.f32.gmra.mxu0 %v332
        %v448 = vpop.f32.mrf.mxu0
        %v449 = vadd.f32 0.0, %v448
        %450 = vmatmul.f32.gmra.mxu0 %v335
        %v451 = vpop.f32.mrf.mxu0
        %v452 = vadd.f32 0.0, %v451
        %453 = vmatmul.f32.gmra.mxu0 %v338
        %v454 = vpop.f32.mrf.mxu0
        %v455 = vadd.f32 0.0, %v454
        %456 = vmatmul.f32.gmra.mxu0 %v341
        %v457 = vpop.f32.mrf.mxu0
        %v458 = vadd.f32 0.0, %v457
        %459 = vmatmul.f32.gmra.mxu0 %v344
        %v460 = vpop.f32.mrf.mxu0
        %v461 = vadd.f32 0.0, %v460
        %462 = vmatmul.f32.gmra.mxu0 %v347
        %v463 = vpop.f32.mrf.mxu0
        %v464 = vadd.f32 0.0, %v463
        %465 = vmatmul.f32.gmra.mxu0 %v350
        %v466 = vpop.f32.mrf.mxu0
        %v467 = vadd.f32 0.0, %v466
        %468 = vmatmul.f32.gmra.mxu0 %v353
        %v469 = vpop.f32.mrf.mxu0
        %v470 = vadd.f32 0.0, %v469
        %471 = vmatmul.f32.gmra.mxu0 %v356
        %v472 = vpop.f32.mrf.mxu0
        %v473 = vadd.f32 0.0, %v472
        %474 = vmatmul.f32.gmra.mxu0 %v359
        %v475 = vpop.f32.mrf.mxu0
        %v476 = vadd.f32 0.0, %v475
        %477 = vmatmul.f32.gmra.mxu0 %v362
        %v478 = vpop.f32.mrf.mxu0
        %v479 = vadd.f32 0.0, %v478
        %480 = vmatmul.f32.gmra.mxu0 %v365
        %v481 = vpop.f32.mrf.mxu0
        %v482 = vadd.f32 0.0, %v481
        %483 = vmatmul.f32.gmra.mxu0 %v368
        %v484 = vpop.f32.mrf.mxu0
        %v485 = vadd.f32 0.0, %v484
        %486 = vmatmul.f32.gmra.mxu0 %v371
        %v487 = vpop.f32.mrf.mxu0
        %v488 = vadd.f32 0.0, %v487
        %489 = vmatmul.f32.gmra.mxu0 %v374
        %v490 = vpop.f32.mrf.mxu0
        %v491 = vadd.f32 0.0, %v490
        %492 = vmatmul.f32.gmra.mxu0 %v377
        %v493 = vpop.f32.mrf.mxu0
        %v494 = vadd.f32 0.0, %v493
        %495 = vmatmul.f32.gmra.mxu0 %v380
        %v496 = vpop.f32.mrf.mxu0
        %v497 = vadd.f32 0.0, %v496
        %498 = vmatmul.f32.gmra.mxu0 %v383
        %v499 = vpop.f32.mrf.mxu0
        %v500 = vadd.f32 0.0, %v499
        %501 = vmatmul.f32.gmra.mxu0 %v386
        %v502 = vpop.f32.mrf.mxu0
        %v503 = vadd.f32 0.0, %v502
        %504 = vmatmul.f32.gmra.mxu0 %v389
        %v505 = vpop.f32.mrf.mxu0
        %v506 = vadd.f32 0.0, %v505
        %507 = vmatmul.f32.gmra.mxu0 %v392
        %v508 = vpop.f32.mrf.mxu0
        %v509 = vadd.f32 0.0, %v508
        %510 = vmatmul.f32.gmra.mxu0 %v395
        %v511 = vpop.f32.mrf.mxu0
        %v512 = vadd.f32 0.0, %v511
        %513 = vmatmul.f32.gmra.mxu0 %v398
        %v514 = vpop.f32.mrf.mxu0
        %v515 = vadd.f32 0.0, %v514
        %516 = vmatmul.f32.gmra.mxu0 %v401
        %v517 = vpop.f32.mrf.mxu0
        %v518 = vadd.f32 0.0, %v517
        %519 = vmatmul.f32.gmra.mxu0 %v404
        %v520 = vpop.f32.mrf.mxu0
        %v521 = vadd.f32 0.0, %v520
        %522 = vmatmul.f32.gmra.mxu0 %v407
        %v523 = vpop.f32.mrf.mxu0
        %v524 = vadd.f32 0.0, %v523
        %525 = vmatmul.f32.gmra.mxu0 %v410
        %v526 = vpop.f32.mrf.mxu0
        %v527 = vadd.f32 0.0, %v526
        %528 = vmatmul.f32.gmra.mxu0 %v413
        %v529 = vpop.f32.mrf.mxu0
        %v530 = vadd.f32 0.0, %v529
        %531 = vdwg.mxu0
        %v532 = vld [vmem:[%s2] sm:$0x1]
        %v534 = vperm.slane %v532, 0
        %v536 = vmul.f32 %v437, %v534
        %v537 = vmul.f32 %v440, %v534
        %v538 = vmul.f32 %v443, %v534
        %v539 = vmul.f32 %v446, %v534
        %v540 = vmul.f32 %v449, %v534
        %v541 = vmul.f32 %v452, %v534
        %v542 = vmul.f32 %v455, %v534
        %v543 = vmul.f32 %v458, %v534
        %v544 = vmul.f32 %v461, %v534
        %v545 = vmul.f32 %v464, %v534
        %v546 = vmul.f32 %v467, %v534
        %v547 = vmul.f32 %v470, %v534
        %v548 = vmul.f32 %v473, %v534
        %v549 = vmul.f32 %v476, %v534
        %v550 = vmul.f32 %v479, %v534
        %v551 = vmul.f32 %v482, %v534
        %v552 = vmul.f32 %v485, %v534
        %v553 = vmul.f32 %v488, %v534
        %v554 = vmul.f32 %v491, %v534
        %v555 = vmul.f32 %v494, %v534
        %v556 = vmul.f32 %v497, %v534
        %v557 = vmul.f32 %v500, %v534
        %v558 = vmul.f32 %v503, %v534
        %v559 = vmul.f32 %v506, %v534
        %v560 = vmul.f32 %v509, %v534
        %v561 = vmul.f32 %v512, %v534
        %v562 = vmul.f32 %v515, %v534
        %v563 = vmul.f32 %v518, %v534
        %v564 = vmul.f32 %v521, %v534
        %v565 = vmul.f32 %v524, %v534
        %v566 = vmul.f32 %v527, %v534
        %v567 = vmul.f32 %v530, %v534
        %v568 = vld [vmem:[%s3] sm:$0x1]
        %v570 = vperm.slane %v568, 0
        %v572 = vadd.f32 %v536, %v570
        %v573 = vadd.f32 %v537, %v570
        %v574 = vadd.f32 %v538, %v570
        %v575 = vadd.f32 %v539, %v570
        %v576 = vadd.f32 %v540, %v570
        %v577 = vadd.f32 %v541, %v570
        %v578 = vadd.f32 %v542, %v570
        %v579 = vadd.f32 %v543, %v570
        %v580 = vadd.f32 %v544, %v570
        %v581 = vadd.f32 %v545, %v570
        %v582 = vadd.f32 %v546, %v570
        %v583 = vadd.f32 %v547, %v570
        %v584 = vadd.f32 %v548, %v570
        %v585 = vadd.f32 %v549, %v570
        %v586 = vadd.f32 %v550, %v570
        %v587 = vadd.f32 %v551, %v570
        %v588 = vadd.f32 %v552, %v570
        %v589 = vadd.f32 %v553, %v570
        %v590 = vadd.f32 %v554, %v570
        %v591 = vadd.f32 %v555, %v570
        %v592 = vadd.f32 %v556, %v570
        %v593 = vadd.f32 %v557, %v570
        %v594 = vadd.f32 %v558, %v570
        %v595 = vadd.f32 %v559, %v570
        %v596 = vadd.f32 %v560, %v570
        %v597 = vadd.f32 %v561, %v570
        %v598 = vadd.f32 %v562, %v570
        %v599 = vadd.f32 %v563, %v570
        %v600 = vadd.f32 %v564, %v570
        %v601 = vadd.f32 %v565, %v570
        %v602 = vadd.f32 %v566, %v570
        %v603 = vadd.f32 %v567, %v570
        %v604 = vxor.u32 %v572, 2147483648
        %v605 = vxor.u32 %v573, 2147483648
        %v606 = vxor.u32 %v574, 2147483648
        %v607 = vxor.u32 %v575, 2147483648
        %v608 = vxor.u32 %v576, 2147483648
        %v609 = vxor.u32 %v577, 2147483648
        %v610 = vxor.u32 %v578, 2147483648
        %v611 = vxor.u32 %v579, 2147483648
        %v612 = vxor.u32 %v580, 2147483648
        %v613 = vxor.u32 %v581, 2147483648
        %v614 = vxor.u32 %v582, 2147483648
        %v615 = vxor.u32 %v583, 2147483648
        %v616 = vxor.u32 %v584, 2147483648
        %v617 = vxor.u32 %v585, 2147483648
        %v618 = vxor.u32 %v586, 2147483648
        %v619 = vxor.u32 %v587, 2147483648
        %v620 = vxor.u32 %v588, 2147483648
        %v621 = vxor.u32 %v589, 2147483648
        %v622 = vxor.u32 %v590, 2147483648
        %v623 = vxor.u32 %v591, 2147483648
        %v624 = vxor.u32 %v592, 2147483648
        %v625 = vxor.u32 %v593, 2147483648
        %v626 = vxor.u32 %v594, 2147483648
        %v627 = vxor.u32 %v595, 2147483648
        %v628 = vxor.u32 %v596, 2147483648
        %v629 = vxor.u32 %v597, 2147483648
        %v630 = vxor.u32 %v598, 2147483648
        %v631 = vxor.u32 %v599, 2147483648
        %v632 = vxor.u32 %v600, 2147483648
        %v633 = vxor.u32 %v601, 2147483648
        %v634 = vxor.u32 %v602, 2147483648
        %v635 = vxor.u32 %v603, 2147483648
        %v636 = vmul.f32 %v604, 1.442695
        %v637 = vpow.pop %v636
        %v638 = vmul.f32 %v605, 1.442695
        %v639 = vpow.pop %v638
        %v640 = vmul.f32 %v606, 1.442695
        %v641 = vpow.pop %v640
        %v642 = vmul.f32 %v607, 1.442695
        %v643 = vpow.pop %v642
        %v644 = vmul.f32 %v608, 1.442695
        %v645 = vpow.pop %v644
        %v646 = vmul.f32 %v609, 1.442695
        %v647 = vpow.pop %v646
        %v648 = vmul.f32 %v610, 1.442695
        %v649 = vpow.pop %v648
        %v650 = vmul.f32 %v611, 1.442695
        %v651 = vpow.pop %v650
        %v652 = vmul.f32 %v612, 1.442695
        %v653 = vpow.pop %v652
        %v654 = vmul.f32 %v613, 1.442695
        %v655 = vpow.pop %v654
        %v656 = vmul.f32 %v614, 1.442695
        %v657 = vpow.pop %v656
        %v658 = vmul.f32 %v615, 1.442695
        %v659 = vpow.pop %v658
        %v660 = vmul.f32 %v616, 1.442695
        %v661 = vpow.pop %v660
        %v662 = vmul.f32 %v617, 1.442695
        %v663 = vpow.pop %v662
        %v664 = vmul.f32 %v618, 1.442695
        %v665 = vpow.pop %v664
        %v666 = vmul.f32 %v619, 1.442695
        %v667 = vpow.pop %v666
        %v668 = vmul.f32 %v620, 1.442695
        %v669 = vpow.pop %v668
        %v670 = vmul.f32 %v621, 1.442695
        %v671 = vpow.pop %v670
        %v672 = vmul.f32 %v622, 1.442695
        %v673 = vpow.pop %v672
        %v674 = vmul.f32 %v623, 1.442695
        %v675 = vpow.pop %v674
        %v676 = vmul.f32 %v624, 1.442695
        %v677 = vpow.pop %v676
        %v678 = vmul.f32 %v625, 1.442695
        %v679 = vpow.pop %v678
        %v680 = vmul.f32 %v626, 1.442695
        %v681 = vpow.pop %v680
        %v682 = vmul.f32 %v627, 1.442695
        %v683 = vpow.pop %v682
        %v684 = vmul.f32 %v628, 1.442695
        %v685 = vpow.pop %v684
        %v686 = vmul.f32 %v629, 1.442695
        %v687 = vpow.pop %v686
        %v688 = vmul.f32 %v630, 1.442695
        %v689 = vpow.pop %v688
        %v690 = vmul.f32 %v631, 1.442695
        %v691 = vpow.pop %v690
        %v692 = vmul.f32 %v632, 1.442695
        %v693 = vpow.pop %v692
        %v694 = vmul.f32 %v633, 1.442695
        %v695 = vpow.pop %v694
        %v696 = vmul.f32 %v634, 1.442695
        %v697 = vpow.pop %v696
        %v698 = vmul.f32 %v635, 1.442695
        %v699 = vpow.pop %v698
        %v700 = vadd.f32 %v637, 1.0
        %v701 = vadd.f32 %v639, 1.0
        %v702 = vadd.f32 %v641, 1.0
        %v703 = vadd.f32 %v643, 1.0
        %v704 = vadd.f32 %v645, 1.0
        %v705 = vadd.f32 %v647, 1.0
        %v706 = vadd.f32 %v649, 1.0
        %v707 = vadd.f32 %v651, 1.0
        %v708 = vadd.f32 %v653, 1.0
        %v709 = vadd.f32 %v655, 1.0
        %v710 = vadd.f32 %v657, 1.0
        %v711 = vadd.f32 %v659, 1.0
        %v712 = vadd.f32 %v661, 1.0
        %v713 = vadd.f32 %v663, 1.0
        %v714 = vadd.f32 %v665, 1.0
        %v715 = vadd.f32 %v667, 1.0
        %v716 = vadd.f32 %v669, 1.0
        %v717 = vadd.f32 %v671, 1.0
        %v718 = vadd.f32 %v673, 1.0
        %v719 = vadd.f32 %v675, 1.0
        %v720 = vadd.f32 %v677, 1.0
        %v721 = vadd.f32 %v679, 1.0
        %v722 = vadd.f32 %v681, 1.0
        %v723 = vadd.f32 %v683, 1.0
        %v724 = vadd.f32 %v685, 1.0
        %v725 = vadd.f32 %v687, 1.0
        %v726 = vadd.f32 %v689, 1.0
        %v727 = vadd.f32 %v691, 1.0
        %v728 = vadd.f32 %v693, 1.0
        %v729 = vadd.f32 %v695, 1.0
        %v730 = vadd.f32 %v697, 1.0
        %v731 = vadd.f32 %v699, 1.0
        %v732 = vrcp.pop %v700
        %v733 = vmul.f32 %v700, %v732
        %v734 = vsub.f32 1.0, %v733
        %v735 = vmul.f32 %v732, %v734
        %v736 = vadd.f32 %v732, %v735
        %vm737 = vweird.f32 %v700
        %vm738 = vweird.f32 %v732
        %vm739 = vmor %vm737, %vm738
        %v740 = vsel %vm739, %v732, %v736
        %v741 = vand.u32 2147483647, %v700
        %vm742 = vcmp.eq.f32.partialorder %v741, 8.507059e+37
        %v743 = vand.u32 %v700, 2147483648
        %v744 = vor.u32 1.1754944e-38, %v743
        %v745 = vsel %vm742, %v744, %v740
        %v746 = vmul.f32 1.0, %v745
        %v747 = vrcp.pop %v701
        %v748 = vmul.f32 %v701, %v747
        %v749 = vsub.f32 1.0, %v748
        %v750 = vmul.f32 %v747, %v749
        %v751 = vadd.f32 %v747, %v750
        %vm752 = vweird.f32 %v701
        %vm753 = vweird.f32 %v747
        %vm754 = vmor %vm752, %vm753
        %v755 = vsel %vm754, %v747, %v751
        %v756 = vand.u32 2147483647, %v701
        %vm757 = vcmp.eq.f32.partialorder %v756, 8.507059e+37
        %v758 = vand.u32 %v701, 2147483648
        %v759 = vor.u32 1.1754944e-38, %v758
        %v760 = vsel %vm757, %v759, %v755
        %v761 = vmul.f32 1.0, %v760
        %v762 = vrcp.pop %v702
        %v763 = vmul.f32 %v702, %v762
        %v764 = vsub.f32 1.0, %v763
        %v765 = vmul.f32 %v762, %v764
        %v766 = vadd.f32 %v762, %v765
        %vm767 = vweird.f32 %v702
        %vm768 = vweird.f32 %v762
        %vm769 = vmor %vm767, %vm768
        %v770 = vsel %vm769, %v762, %v766
        %v771 = vand.u32 2147483647, %v702
        %vm772 = vcmp.eq.f32.partialorder %v771, 8.507059e+37
        %v773 = vand.u32 %v702, 2147483648
        %v774 = vor.u32 1.1754944e-38, %v773
        %v775 = vsel %vm772, %v774, %v770
        %v776 = vmul.f32 1.0, %v775
        %v777 = vrcp.pop %v703
        %v778 = vmul.f32 %v703, %v777
        %v779 = vsub.f32 1.0, %v778
        %v780 = vmul.f32 %v777, %v779
        %v781 = vadd.f32 %v777, %v780
        %vm782 = vweird.f32 %v703
        %vm783 = vweird.f32 %v777
        %vm784 = vmor %vm782, %vm783
        %v785 = vsel %vm784, %v777, %v781
        %v786 = vand.u32 2147483647, %v703
        %vm787 = vcmp.eq.f32.partialorder %v786, 8.507059e+37
        %v788 = vand.u32 %v703, 2147483648
        %v789 = vor.u32 1.1754944e-38, %v788
        %v790 = vsel %vm787, %v789, %v785
        %v791 = vmul.f32 1.0, %v790
        %v792 = vrcp.pop %v704
        %v793 = vmul.f32 %v704, %v792
        %v794 = vsub.f32 1.0, %v793
        %v795 = vmul.f32 %v792, %v794
        %v796 = vadd.f32 %v792, %v795
        %vm797 = vweird.f32 %v704
        %vm798 = vweird.f32 %v792
        %vm799 = vmor %vm797, %vm798
        %v800 = vsel %vm799, %v792, %v796
        %v801 = vand.u32 2147483647, %v704
        %vm802 = vcmp.eq.f32.partialorder %v801, 8.507059e+37
        %v803 = vand.u32 %v704, 2147483648
        %v804 = vor.u32 1.1754944e-38, %v803
        %v805 = vsel %vm802, %v804, %v800
        %v806 = vmul.f32 1.0, %v805
        %v807 = vrcp.pop %v705
        %v808 = vmul.f32 %v705, %v807
        %v809 = vsub.f32 1.0, %v808
        %v810 = vmul.f32 %v807, %v809
        %v811 = vadd.f32 %v807, %v810
        %vm812 = vweird.f32 %v705
        %vm813 = vweird.f32 %v807
        %vm814 = vmor %vm812, %vm813
        %v815 = vsel %vm814, %v807, %v811
        %v816 = vand.u32 2147483647, %v705
        %vm817 = vcmp.eq.f32.partialorder %v816, 8.507059e+37
        %v818 = vand.u32 %v705, 2147483648
        %v819 = vor.u32 1.1754944e-38, %v818
        %v820 = vsel %vm817, %v819, %v815
        %v821 = vmul.f32 1.0, %v820
        %v822 = vrcp.pop %v706
        %v823 = vmul.f32 %v706, %v822
        %v824 = vsub.f32 1.0, %v823
        %v825 = vmul.f32 %v822, %v824
        %v826 = vadd.f32 %v822, %v825
        %vm827 = vweird.f32 %v706
        %vm828 = vweird.f32 %v822
        %vm829 = vmor %vm827, %vm828
        %v830 = vsel %vm829, %v822, %v826
        %v831 = vand.u32 2147483647, %v706
        %vm832 = vcmp.eq.f32.partialorder %v831, 8.507059e+37
        %v833 = vand.u32 %v706, 2147483648
        %v834 = vor.u32 1.1754944e-38, %v833
        %v835 = vsel %vm832, %v834, %v830
        %v836 = vmul.f32 1.0, %v835
        %v837 = vrcp.pop %v707
        %v838 = vmul.f32 %v707, %v837
        %v839 = vsub.f32 1.0, %v838
        %v840 = vmul.f32 %v837, %v839
        %v841 = vadd.f32 %v837, %v840
        %vm842 = vweird.f32 %v707
        %vm843 = vweird.f32 %v837
        %vm844 = vmor %vm842, %vm843
        %v845 = vsel %vm844, %v837, %v841
        %v846 = vand.u32 2147483647, %v707
        %vm847 = vcmp.eq.f32.partialorder %v846, 8.507059e+37
        %v848 = vand.u32 %v707, 2147483648
        %v849 = vor.u32 1.1754944e-38, %v848
        %v850 = vsel %vm847, %v849, %v845
        %v851 = vmul.f32 1.0, %v850
        %v852 = vrcp.pop %v708
        %v853 = vmul.f32 %v708, %v852
        %v854 = vsub.f32 1.0, %v853
        %v855 = vmul.f32 %v852, %v854
        %v856 = vadd.f32 %v852, %v855
        %vm857 = vweird.f32 %v708
        %vm858 = vweird.f32 %v852
        %vm859 = vmor %vm857, %vm858
        %v860 = vsel %vm859, %v852, %v856
        %v861 = vand.u32 2147483647, %v708
        %vm862 = vcmp.eq.f32.partialorder %v861, 8.507059e+37
        %v863 = vand.u32 %v708, 2147483648
        %v864 = vor.u32 1.1754944e-38, %v863
        %v865 = vsel %vm862, %v864, %v860
        %v866 = vmul.f32 1.0, %v865
        %v867 = vrcp.pop %v709
        %v868 = vmul.f32 %v709, %v867
        %v869 = vsub.f32 1.0, %v868
        %v870 = vmul.f32 %v867, %v869
        %v871 = vadd.f32 %v867, %v870
        %vm872 = vweird.f32 %v709
        %vm873 = vweird.f32 %v867
        %vm874 = vmor %vm872, %vm873
        %v875 = vsel %vm874, %v867, %v871
        %v876 = vand.u32 2147483647, %v709
        %vm877 = vcmp.eq.f32.partialorder %v876, 8.507059e+37
        %v878 = vand.u32 %v709, 2147483648
        %v879 = vor.u32 1.1754944e-38, %v878
        %v880 = vsel %vm877, %v879, %v875
        %v881 = vmul.f32 1.0, %v880
        %v882 = vrcp.pop %v710
        %v883 = vmul.f32 %v710, %v882
        %v884 = vsub.f32 1.0, %v883
        %v885 = vmul.f32 %v882, %v884
        %v886 = vadd.f32 %v882, %v885
        %vm887 = vweird.f32 %v710
        %vm888 = vweird.f32 %v882
        %vm889 = vmor %vm887, %vm888
        %v890 = vsel %vm889, %v882, %v886
        %v891 = vand.u32 2147483647, %v710
        %vm892 = vcmp.eq.f32.partialorder %v891, 8.507059e+37
        %v893 = vand.u32 %v710, 2147483648
        %v894 = vor.u32 1.1754944e-38, %v893
        %v895 = vsel %vm892, %v894, %v890
        %v896 = vmul.f32 1.0, %v895
        %v897 = vrcp.pop %v711
        %v898 = vmul.f32 %v711, %v897
        %v899 = vsub.f32 1.0, %v898
        %v900 = vmul.f32 %v897, %v899
        %v901 = vadd.f32 %v897, %v900
        %vm902 = vweird.f32 %v711
        %vm903 = vweird.f32 %v897
        %vm904 = vmor %vm902, %vm903
        %v905 = vsel %vm904, %v897, %v901
        %v906 = vand.u32 2147483647, %v711
        %vm907 = vcmp.eq.f32.partialorder %v906, 8.507059e+37
        %v908 = vand.u32 %v711, 2147483648
        %v909 = vor.u32 1.1754944e-38, %v908
        %v910 = vsel %vm907, %v909, %v905
        %v911 = vmul.f32 1.0, %v910
        %v912 = vrcp.pop %v712
        %v913 = vmul.f32 %v712, %v912
        %v914 = vsub.f32 1.0, %v913
        %v915 = vmul.f32 %v912, %v914
        %v916 = vadd.f32 %v912, %v915
        %vm917 = vweird.f32 %v712
        %vm918 = vweird.f32 %v912
        %vm919 = vmor %vm917, %vm918
        %v920 = vsel %vm919, %v912, %v916
        %v921 = vand.u32 2147483647, %v712
        %vm922 = vcmp.eq.f32.partialorder %v921, 8.507059e+37
        %v923 = vand.u32 %v712, 2147483648
        %v924 = vor.u32 1.1754944e-38, %v923
        %v925 = vsel %vm922, %v924, %v920
        %v926 = vmul.f32 1.0, %v925
        %v927 = vrcp.pop %v713
        %v928 = vmul.f32 %v713, %v927
        %v929 = vsub.f32 1.0, %v928
        %v930 = vmul.f32 %v927, %v929
        %v931 = vadd.f32 %v927, %v930
        %vm932 = vweird.f32 %v713
        %vm933 = vweird.f32 %v927
        %vm934 = vmor %vm932, %vm933
        %v935 = vsel %vm934, %v927, %v931
        %v936 = vand.u32 2147483647, %v713
        %vm937 = vcmp.eq.f32.partialorder %v936, 8.507059e+37
        %v938 = vand.u32 %v713, 2147483648
        %v939 = vor.u32 1.1754944e-38, %v938
        %v940 = vsel %vm937, %v939, %v935
        %v941 = vmul.f32 1.0, %v940
        %v942 = vrcp.pop %v714
        %v943 = vmul.f32 %v714, %v942
        %v944 = vsub.f32 1.0, %v943
        %v945 = vmul.f32 %v942, %v944
        %v946 = vadd.f32 %v942, %v945
        %vm947 = vweird.f32 %v714
        %vm948 = vweird.f32 %v942
        %vm949 = vmor %vm947, %vm948
        %v950 = vsel %vm949, %v942, %v946
        %v951 = vand.u32 2147483647, %v714
        %vm952 = vcmp.eq.f32.partialorder %v951, 8.507059e+37
        %v953 = vand.u32 %v714, 2147483648
        %v954 = vor.u32 1.1754944e-38, %v953
        %v955 = vsel %vm952, %v954, %v950
        %v956 = vmul.f32 1.0, %v955
        %v957 = vrcp.pop %v715
        %v958 = vmul.f32 %v715, %v957
        %v959 = vsub.f32 1.0, %v958
        %v960 = vmul.f32 %v957, %v959
        %v961 = vadd.f32 %v957, %v960
        %vm962 = vweird.f32 %v715
        %vm963 = vweird.f32 %v957
        %vm964 = vmor %vm962, %vm963
        %v965 = vsel %vm964, %v957, %v961
        %v966 = vand.u32 2147483647, %v715
        %vm967 = vcmp.eq.f32.partialorder %v966, 8.507059e+37
        %v968 = vand.u32 %v715, 2147483648
        %v969 = vor.u32 1.1754944e-38, %v968
        %v970 = vsel %vm967, %v969, %v965
        %v971 = vmul.f32 1.0, %v970
        %v972 = vrcp.pop %v716
        %v973 = vmul.f32 %v716, %v972
        %v974 = vsub.f32 1.0, %v973
        %v975 = vmul.f32 %v972, %v974
        %v976 = vadd.f32 %v972, %v975
        %vm977 = vweird.f32 %v716
        %vm978 = vweird.f32 %v972
        %vm979 = vmor %vm977, %vm978
        %v980 = vsel %vm979, %v972, %v976
        %v981 = vand.u32 2147483647, %v716
        %vm982 = vcmp.eq.f32.partialorder %v981, 8.507059e+37
        %v983 = vand.u32 %v716, 2147483648
        %v984 = vor.u32 1.1754944e-38, %v983
        %v985 = vsel %vm982, %v984, %v980
        %v986 = vmul.f32 1.0, %v985
        %v987 = vrcp.pop %v717
        %v988 = vmul.f32 %v717, %v987
        %v989 = vsub.f32 1.0, %v988
        %v990 = vmul.f32 %v987, %v989
        %v991 = vadd.f32 %v987, %v990
        %vm992 = vweird.f32 %v717
        %vm993 = vweird.f32 %v987
        %vm994 = vmor %vm992, %vm993
        %v995 = vsel %vm994, %v987, %v991
        %v996 = vand.u32 2147483647, %v717
        %vm997 = vcmp.eq.f32.partialorder %v996, 8.507059e+37
        %v998 = vand.u32 %v717, 2147483648
        %v999 = vor.u32 1.1754944e-38, %v998
        %v1000 = vsel %vm997, %v999, %v995
        %v1001 = vmul.f32 1.0, %v1000
        %v1002 = vrcp.pop %v718
        %v1003 = vmul.f32 %v718, %v1002
        %v1004 = vsub.f32 1.0, %v1003
        %v1005 = vmul.f32 %v1002, %v1004
        %v1006 = vadd.f32 %v1002, %v1005
        %vm1007 = vweird.f32 %v718
        %vm1008 = vweird.f32 %v1002
        %vm1009 = vmor %vm1007, %vm1008
        %v1010 = vsel %vm1009, %v1002, %v1006
        %v1011 = vand.u32 2147483647, %v718
        %vm1012 = vcmp.eq.f32.partialorder %v1011, 8.507059e+37
        %v1013 = vand.u32 %v718, 2147483648
        %v1014 = vor.u32 1.1754944e-38, %v1013
        %v1015 = vsel %vm1012, %v1014, %v1010
        %v1016 = vmul.f32 1.0, %v1015
        %v1017 = vrcp.pop %v719
        %v1018 = vmul.f32 %v719, %v1017
        %v1019 = vsub.f32 1.0, %v1018
        %v1020 = vmul.f32 %v1017, %v1019
        %v1021 = vadd.f32 %v1017, %v1020
        %vm1022 = vweird.f32 %v719
        %vm1023 = vweird.f32 %v1017
        %vm1024 = vmor %vm1022, %vm1023
        %v1025 = vsel %vm1024, %v1017, %v1021
        %v1026 = vand.u32 2147483647, %v719
        %vm1027 = vcmp.eq.f32.partialorder %v1026, 8.507059e+37
        %v1028 = vand.u32 %v719, 2147483648
        %v1029 = vor.u32 1.1754944e-38, %v1028
        %v1030 = vsel %vm1027, %v1029, %v1025
        %v1031 = vmul.f32 1.0, %v1030
        %v1032 = vrcp.pop %v720
        %v1033 = vmul.f32 %v720, %v1032
        %v1034 = vsub.f32 1.0, %v1033
        %v1035 = vmul.f32 %v1032, %v1034
        %v1036 = vadd.f32 %v1032, %v1035
        %vm1037 = vweird.f32 %v720
        %vm1038 = vweird.f32 %v1032
        %vm1039 = vmor %vm1037, %vm1038
        %v1040 = vsel %vm1039, %v1032, %v1036
        %v1041 = vand.u32 2147483647, %v720
        %vm1042 = vcmp.eq.f32.partialorder %v1041, 8.507059e+37
        %v1043 = vand.u32 %v720, 2147483648
        %v1044 = vor.u32 1.1754944e-38, %v1043
        %v1045 = vsel %vm1042, %v1044, %v1040
        %v1046 = vmul.f32 1.0, %v1045
        %v1047 = vrcp.pop %v721
        %v1048 = vmul.f32 %v721, %v1047
        %v1049 = vsub.f32 1.0, %v1048
        %v1050 = vmul.f32 %v1047, %v1049
        %v1051 = vadd.f32 %v1047, %v1050
        %vm1052 = vweird.f32 %v721
        %vm1053 = vweird.f32 %v1047
        %vm1054 = vmor %vm1052, %vm1053
        %v1055 = vsel %vm1054, %v1047, %v1051
        %v1056 = vand.u32 2147483647, %v721
        %vm1057 = vcmp.eq.f32.partialorder %v1056, 8.507059e+37
        %v1058 = vand.u32 %v721, 2147483648
        %v1059 = vor.u32 1.1754944e-38, %v1058
        %v1060 = vsel %vm1057, %v1059, %v1055
        %v1061 = vmul.f32 1.0, %v1060
        %v1062 = vrcp.pop %v722
        %v1063 = vmul.f32 %v722, %v1062
        %v1064 = vsub.f32 1.0, %v1063
        %v1065 = vmul.f32 %v1062, %v1064
        %v1066 = vadd.f32 %v1062, %v1065
        %vm1067 = vweird.f32 %v722
        %vm1068 = vweird.f32 %v1062
        %vm1069 = vmor %vm1067, %vm1068
        %v1070 = vsel %vm1069, %v1062, %v1066
        %v1071 = vand.u32 2147483647, %v722
        %vm1072 = vcmp.eq.f32.partialorder %v1071, 8.507059e+37
        %v1073 = vand.u32 %v722, 2147483648
        %v1074 = vor.u32 1.1754944e-38, %v1073
        %v1075 = vsel %vm1072, %v1074, %v1070
        %v1076 = vmul.f32 1.0, %v1075
        %v1077 = vrcp.pop %v723
        %v1078 = vmul.f32 %v723, %v1077
        %v1079 = vsub.f32 1.0, %v1078
        %v1080 = vmul.f32 %v1077, %v1079
        %v1081 = vadd.f32 %v1077, %v1080
        %vm1082 = vweird.f32 %v723
        %vm1083 = vweird.f32 %v1077
        %vm1084 = vmor %vm1082, %vm1083
        %v1085 = vsel %vm1084, %v1077, %v1081
        %v1086 = vand.u32 2147483647, %v723
        %vm1087 = vcmp.eq.f32.partialorder %v1086, 8.507059e+37
        %v1088 = vand.u32 %v723, 2147483648
        %v1089 = vor.u32 1.1754944e-38, %v1088
        %v1090 = vsel %vm1087, %v1089, %v1085
        %v1091 = vmul.f32 1.0, %v1090
        %v1092 = vrcp.pop %v724
        %v1093 = vmul.f32 %v724, %v1092
        %v1094 = vsub.f32 1.0, %v1093
        %v1095 = vmul.f32 %v1092, %v1094
        %v1096 = vadd.f32 %v1092, %v1095
        %vm1097 = vweird.f32 %v724
        %vm1098 = vweird.f32 %v1092
        %vm1099 = vmor %vm1097, %vm1098
        %v1100 = vsel %vm1099, %v1092, %v1096
        %v1101 = vand.u32 2147483647, %v724
        %vm1102 = vcmp.eq.f32.partialorder %v1101, 8.507059e+37
        %v1103 = vand.u32 %v724, 2147483648
        %v1104 = vor.u32 1.1754944e-38, %v1103
        %v1105 = vsel %vm1102, %v1104, %v1100
        %v1106 = vmul.f32 1.0, %v1105
        %v1107 = vrcp.pop %v725
        %v1108 = vmul.f32 %v725, %v1107
        %v1109 = vsub.f32 1.0, %v1108
        %v1110 = vmul.f32 %v1107, %v1109
        %v1111 = vadd.f32 %v1107, %v1110
        %vm1112 = vweird.f32 %v725
        %vm1113 = vweird.f32 %v1107
        %vm1114 = vmor %vm1112, %vm1113
        %v1115 = vsel %vm1114, %v1107, %v1111
        %v1116 = vand.u32 2147483647, %v725
        %vm1117 = vcmp.eq.f32.partialorder %v1116, 8.507059e+37
        %v1118 = vand.u32 %v725, 2147483648
        %v1119 = vor.u32 1.1754944e-38, %v1118
        %v1120 = vsel %vm1117, %v1119, %v1115
        %v1121 = vmul.f32 1.0, %v1120
        %v1122 = vrcp.pop %v726
        %v1123 = vmul.f32 %v726, %v1122
        %v1124 = vsub.f32 1.0, %v1123
        %v1125 = vmul.f32 %v1122, %v1124
        %v1126 = vadd.f32 %v1122, %v1125
        %vm1127 = vweird.f32 %v726
        %vm1128 = vweird.f32 %v1122
        %vm1129 = vmor %vm1127, %vm1128
        %v1130 = vsel %vm1129, %v1122, %v1126
        %v1131 = vand.u32 2147483647, %v726
        %vm1132 = vcmp.eq.f32.partialorder %v1131, 8.507059e+37
        %v1133 = vand.u32 %v726, 2147483648
        %v1134 = vor.u32 1.1754944e-38, %v1133
        %v1135 = vsel %vm1132, %v1134, %v1130
        %v1136 = vmul.f32 1.0, %v1135
        %v1137 = vrcp.pop %v727
        %v1138 = vmul.f32 %v727, %v1137
        %v1139 = vsub.f32 1.0, %v1138
        %v1140 = vmul.f32 %v1137, %v1139
        %v1141 = vadd.f32 %v1137, %v1140
        %vm1142 = vweird.f32 %v727
        %vm1143 = vweird.f32 %v1137
        %vm1144 = vmor %vm1142, %vm1143
        %v1145 = vsel %vm1144, %v1137, %v1141
        %v1146 = vand.u32 2147483647, %v727
        %vm1147 = vcmp.eq.f32.partialorder %v1146, 8.507059e+37
        %v1148 = vand.u32 %v727, 2147483648
        %v1149 = vor.u32 1.1754944e-38, %v1148
        %v1150 = vsel %vm1147, %v1149, %v1145
        %v1151 = vmul.f32 1.0, %v1150
        %v1152 = vrcp.pop %v728
        %v1153 = vmul.f32 %v728, %v1152
        %v1154 = vsub.f32 1.0, %v1153
        %v1155 = vmul.f32 %v1152, %v1154
        %v1156 = vadd.f32 %v1152, %v1155
        %vm1157 = vweird.f32 %v728
        %vm1158 = vweird.f32 %v1152
        %vm1159 = vmor %vm1157, %vm1158
        %v1160 = vsel %vm1159, %v1152, %v1156
        %v1161 = vand.u32 2147483647, %v728
        %vm1162 = vcmp.eq.f32.partialorder %v1161, 8.507059e+37
        %v1163 = vand.u32 %v728, 2147483648
        %v1164 = vor.u32 1.1754944e-38, %v1163
        %v1165 = vsel %vm1162, %v1164, %v1160
        %v1166 = vmul.f32 1.0, %v1165
        %v1167 = vrcp.pop %v729
        %v1168 = vmul.f32 %v729, %v1167
        %v1169 = vsub.f32 1.0, %v1168
        %v1170 = vmul.f32 %v1167, %v1169
        %v1171 = vadd.f32 %v1167, %v1170
        %vm1172 = vweird.f32 %v729
        %vm1173 = vweird.f32 %v1167
        %vm1174 = vmor %vm1172, %vm1173
        %v1175 = vsel %vm1174, %v1167, %v1171
        %v1176 = vand.u32 2147483647, %v729
        %vm1177 = vcmp.eq.f32.partialorder %v1176, 8.507059e+37
        %v1178 = vand.u32 %v729, 2147483648
        %v1179 = vor.u32 1.1754944e-38, %v1178
        %v1180 = vsel %vm1177, %v1179, %v1175
        %v1181 = vmul.f32 1.0, %v1180
        %v1182 = vrcp.pop %v730
        %v1183 = vmul.f32 %v730, %v1182
        %v1184 = vsub.f32 1.0, %v1183
        %v1185 = vmul.f32 %v1182, %v1184
        %v1186 = vadd.f32 %v1182, %v1185
        %vm1187 = vweird.f32 %v730
        %vm1188 = vweird.f32 %v1182
        %vm1189 = vmor %vm1187, %vm1188
        %v1190 = vsel %vm1189, %v1182, %v1186
        %v1191 = vand.u32 2147483647, %v730
        %vm1192 = vcmp.eq.f32.partialorder %v1191, 8.507059e+37
        %v1193 = vand.u32 %v730, 2147483648
        %v1194 = vor.u32 1.1754944e-38, %v1193
        %v1195 = vsel %vm1192, %v1194, %v1190
        %v1196 = vmul.f32 1.0, %v1195
        %v1197 = vrcp.pop %v731
        %v1198 = vmul.f32 %v731, %v1197
        %v1199 = vsub.f32 1.0, %v1198
        %v1200 = vmul.f32 %v1197, %v1199
        %v1201 = vadd.f32 %v1197, %v1200
        %vm1202 = vweird.f32 %v731
        %vm1203 = vweird.f32 %v1197
        %vm1204 = vmor %vm1202, %vm1203
        %v1205 = vsel %vm1204, %v1197, %v1201
        %v1206 = vand.u32 2147483647, %v731
        %vm1207 = vcmp.eq.f32.partialorder %v1206, 8.507059e+37
        %v1208 = vand.u32 %v731, 2147483648
        %v1209 = vor.u32 1.1754944e-38, %v1208
        %v1210 = vsel %vm1207, %v1209, %v1205
        %v1211 = vmul.f32 1.0, %v1210
        %v1212 = vmul.f32 %v572, %v746
        %v1213 = vmul.f32 %v573, %v761
        %v1214 = vmul.f32 %v574, %v776
        %v1215 = vmul.f32 %v575, %v791
        %v1216 = vmul.f32 %v576, %v806
        %v1217 = vmul.f32 %v577, %v821
        %v1218 = vmul.f32 %v578, %v836
        %v1219 = vmul.f32 %v579, %v851
        %v1220 = vmul.f32 %v580, %v866
        %v1221 = vmul.f32 %v581, %v881
        %v1222 = vmul.f32 %v582, %v896
        %v1223 = vmul.f32 %v583, %v911
        %v1224 = vmul.f32 %v584, %v926
        %v1225 = vmul.f32 %v585, %v941
        %v1226 = vmul.f32 %v586, %v956
        %v1227 = vmul.f32 %v587, %v971
        %v1228 = vmul.f32 %v588, %v986
        %v1229 = vmul.f32 %v589, %v1001
        %v1230 = vmul.f32 %v590, %v1016
        %v1231 = vmul.f32 %v591, %v1031
        %v1232 = vmul.f32 %v592, %v1046
        %v1233 = vmul.f32 %v593, %v1061
        %v1234 = vmul.f32 %v594, %v1076
        %v1235 = vmul.f32 %v595, %v1091
        %v1236 = vmul.f32 %v596, %v1106
        %v1237 = vmul.f32 %v597, %v1121
        %v1238 = vmul.f32 %v598, %v1136
        %v1239 = vmul.f32 %v599, %v1151
        %v1240 = vmul.f32 %v600, %v1166
        %v1241 = vmul.f32 %v601, %v1181
        %v1242 = vmul.f32 %v602, %v1196
        %v1243 = vmul.f32 %v603, %v1211
        %vm1244 = vcmask 15360
        %1245 = vst.msk [vmem:[%s244] sm:$0xff] %vm1244, %v1212
        %1246 = vst.msk [vmem:[%s244 + $0x8] sm:$0xff] %vm1244, %v1213
        %1247 = vst.msk [vmem:[%s244 + $0x10] sm:$0xff] %vm1244, %v1214
        %1248 = vst.msk [vmem:[%s244 + $0x18] sm:$0xff] %vm1244, %v1215
        %1249 = vst.msk [vmem:[%s244 + $0x20] sm:$0xff] %vm1244, %v1216
        %1250 = vst.msk [vmem:[%s244 + $0x28] sm:$0xff] %vm1244, %v1217
        %1251 = vst.msk [vmem:[%s244 + $0x30] sm:$0xff] %vm1244, %v1218
        %1252 = vst.msk [vmem:[%s244 + $0x38] sm:$0xff] %vm1244, %v1219
        %1253 = vst.msk [vmem:[%s244 + $0x40] sm:$0xff] %vm1244, %v1220
        %1254 = vst.msk [vmem:[%s244 + $0x48] sm:$0xff] %vm1244, %v1221
        %1255 = vst.msk [vmem:[%s244 + $0x50] sm:$0xff] %vm1244, %v1222
        %1256 = vst.msk [vmem:[%s244 + $0x58] sm:$0xff] %vm1244, %v1223
        %1257 = vst.msk [vmem:[%s244 + $0x60] sm:$0xff] %vm1244, %v1224
        %1258 = vst.msk [vmem:[%s244 + $0x68] sm:$0xff] %vm1244, %v1225
        %1259 = vst.msk [vmem:[%s244 + $0x70] sm:$0xff] %vm1244, %v1226
        %1260 = vst.msk [vmem:[%s244 + $0x78] sm:$0xff] %vm1244, %v1227
        %1261 = vst.msk [vmem:[%s244 + $0x80] sm:$0xff] %vm1244, %v1228
        %1262 = vst.msk [vmem:[%s244 + $0x88] sm:$0xff] %vm1244, %v1229
        %1263 = vst.msk [vmem:[%s244 + $0x90] sm:$0xff] %vm1244, %v1230
        %1264 = vst.msk [vmem:[%s244 + $0x98] sm:$0xff] %vm1244, %v1231
        %1265 = vst.msk [vmem:[%s244 + $0xa0] sm:$0xff] %vm1244, %v1232
        %1266 = vst.msk [vmem:[%s244 + $0xa8] sm:$0xff] %vm1244, %v1233
        %1267 = vst.msk [vmem:[%s244 + $0xb0] sm:$0xff] %vm1244, %v1234
        %1268 = vst.msk [vmem:[%s244 + $0xb8] sm:$0xff] %vm1244, %v1235
        %1269 = vst.msk [vmem:[%s244 + $0xc0] sm:$0xff] %vm1244, %v1236
        %1270 = vst.msk [vmem:[%s244 + $0xc8] sm:$0xff] %vm1244, %v1237
        %1271 = vst.msk [vmem:[%s244 + $0xd0] sm:$0xff] %vm1244, %v1238
        %1272 = vst.msk [vmem:[%s244 + $0xd8] sm:$0xff] %vm1244, %v1239
        %1273 = vst.msk [vmem:[%s244 + $0xe0] sm:$0xff] %vm1244, %v1240
        %1274 = vst.msk [vmem:[%s244 + $0xe8] sm:$0xff] %vm1244, %v1241
        %1275 = vst.msk [vmem:[%s244 + $0xf0] sm:$0xff] %vm1244, %v1242
        %1276 = vst.msk [vmem:[%s244 + $0xf8] sm:$0xff] %vm1244, %v1243
        %s1277 = smul.u32 32, %s23
        %p1278 = scmp.lt.s32.totalorder %s22, 1
        %s1279 = scalar_select %p1278, %s22, 1
        %p1280 = scmp.lt.s32.totalorder %s1277, 31
        %s1281 = scalar_select %p1280, %s1277, 31
        %s1282 = smul.addr %s1279, 32
        %s1283 = sadd.s32 %s1281, %s1282
        %s1284 = smul.addr %s1283, 8
        %s1285 = scalar_lea.vmem %s4, %s1284
        // Predicated region
        $region41: #{tpu_custom_call.1} parent=35 // pred_check
          %p1286 = pneg %p141
        $region42: #{tpu_custom_call.1} parent=35 // pred_check_branch
          %1288 = sbr.rel (%p1286) target = $region44
        $region43: #{tpu_custom_call.1} parent=35 // pred_region
          %s1289 = smul.u32 32, %s23
        $region44: #{tpu_custom_call.1} parent=35 // pred_fallthru
          _
      $region36: #{tpu_custom_call.1} parent=5 // pred_fallthru
        _
      %p1290 = scmp.le.s32.totalorder 2, %s13
      // Predicated region
      $region45: #{tpu_custom_call.1} parent=5 // pred_check
        %p1291 = pneg %p1290
      $region46: #{tpu_custom_call.1} parent=5 // pred_check_branch
        %1293 = sbr.rel (%p1291) target = $region48
      $region47: #{tpu_custom_call.1} parent=5 // pred_region
        %s1294 = ssub.s32 %s13, 2
        // Predicated region
        $region49: #{tpu_custom_call.1} parent=47 // pred_check
          %p1295 = pneg %p147
        $region50: #{tpu_custom_call.1} parent=47 // pred_check_branch
          %1297 = sbr.rel (%p1295) target = $region52
        $region51: #{tpu_custom_call.1} parent=47 // pred_region
          %s1298 = smul.u32 32, %s25
          %p1299 = scmp.lt.s32.totalorder %s24, 1
          %s1300 = scalar_select %p1299, %s24, 1
          %p1301 = scmp.lt.s32.totalorder %s1298, 31
          %s1302 = scalar_select %p1301, %s1298, 31
          %s1303 = smul.addr %s1300, 32
          %s1304 = sadd.s32 %s1302, %s1303
          %s1305 = smul.addr %s1304, 8
          %s1306 = scalar_lea.vmem %s4, %s1305
        $region52: #{tpu_custom_call.1} parent=47 // pred_fallthru
          _
      $region48: #{tpu_custom_call.1} parent=5 // pred_fallthru
        _
    $region6: #{tpu_custom_call.1} parent=1 // loop_footer
      %s17 = sadd.s32 1, %s13
    $region7: #{tpu_custom_call.1} parent=1 // loop_footer_branch
      %12 = sbr.rel target = $region3
    $region8: #{tpu_custom_call.1} parent=1 // loop_exit
      _
    %1307 = vsyncpa [#allocation3], 1
    %s1308 = scalar_lea.sflag [#allocation3], 1
    %1309 = vsyncpa %s1308, 1

</llo_original>
